<compile_context>
chip_gen: v7x
topology: tpu7x:2x2x1
jax: 0.10.0
libtpu: 0.0.40
codegen_flags: <defaults>
</compile_context>

<pallas_src>
import functools

import jax
import jax.numpy as jnp
from jax.experimental import pallas as pl
from jax.experimental.pallas import tpu as pltpu

_LANE = 128
_DEF_TILE_M = 1024   # row tile (output rows) of the aggregation matmul
_DEF_TILE_K = 512    # reduction tile over A's columns


def _round_up(x, m):
    return ((x + m - 1) // m) * m


def _vmem_limit_bytes():
    """Generation-aware VMEM budget: capacity minus ~16 MiB compiler headroom."""
    cap = 64 * 1024 * 1024  # conservative default (v7x per-core VMEM)
    try:
        cap = int(pltpu.get_tpu_info().vmem_capacity_bytes)
    except Exception:
        pass
    return int(min(max(cap - 16 * 1024 * 1024, 32 * 1024 * 1024),
                   96 * 1024 * 1024))


def _choose_node_tiling(n):
    """Return (tile_m, tile_k, n_pad): decoupled row/reduction tiles."""
    n = max(int(n), 1)
    if n <= _DEF_TILE_K:
        n_pad = _round_up(n, _LANE)
        return n_pad, n_pad, n_pad
    n_pad = _round_up(n, _DEF_TILE_K)
    tile_k = _DEF_TILE_K
    tile_m = _DEF_TILE_M if n_pad % _DEF_TILE_M == 0 else _DEF_TILE_K
    return tile_m, tile_k, n_pad


def _choose_div_tile(dim, pref):
    """Largest power-of-two-ish tile <= pref that divides dim (dim % 128 == 0)."""
    if dim <= pref:
        return dim
    t = pref
    while dim % t != 0:
        t //= 2
    return max(t, _LANE)


def _capped_tile_m(tile_m, tile_k, f_in_p, f_out_p, vmem_limit):
    """One-step tile_m reduction if the estimated VMEM residency is too big."""
    if tile_m <= tile_k:
        return tile_m
    f_big = max(f_in_p, f_out_p)
    need = (2 * tile_m * tile_k                  # A int8, double-buffered
            + 2 * tile_k * f_big * 2             # Z / X column blocks (bf16)
            + 2 * tile_m * f_out_p * 4           # R (f32)
            + 2 * tile_m * f_out_p * 4           # output block
            + tile_m * f_big * 4                 # f32 accumulator
            + 4 * f_in_p * f_out_p * 2)          # resident W_l / W_r (bf16)
    if need > int(0.6 * vmem_limit):
        return tile_k
    return tile_m


def _cparams(vmem_limit):
    return pltpu.CompilerParams(
        dimension_semantics=("parallel", "arbitrary"),
        vmem_limit_bytes=vmem_limit,
    )


def _pad2(m, rows, cols):
    return jnp.pad(m, ((0, rows - m.shape[0]), (0, cols - m.shape[1])))


# ----------------------------------------------------------------------------
# Projection pre-pass kernels (row-parallel, K-tiled, f32 accumulation)
# ----------------------------------------------------------------------------
def _project_dual_kernel(x_ref, wl_ref, wr_ref, b_ref, z_ref, r_ref,
                         accz_ref, accr_ref):
    # Z = X @ W_l (bf16 out), R = X @ W_r + b (f32 out); X is read once.
    k = pl.program_id(1)

    @pl.when(k == 0)
    def _():
        accz_ref[...] = jnp.zeros_like(accz_ref)
        accr_ref[...] = jnp.zeros_like(accr_ref)

    x = x_ref[...]
    accz_ref[...] += jnp.dot(x, wl_ref[...], preferred_element_type=jnp.float32)
    accr_ref[...] += jnp.dot(x, wr_ref[...], preferred_element_type=jnp.float32)

    @pl.when(k == pl.num_programs(1) - 1)
    def _():
        z_ref[...] = accz_ref[...].astype(z_ref.dtype)
        r_ref[...] = (accr_ref[...] + b_ref[...]).astype(r_ref.dtype)


def _project_single_kernel(x_ref, wr_ref, b_ref, r_ref, accr_ref):
    # R = X @ W_r + b (f32 out).
    k = pl.program_id(1)

    @pl.when(k == 0)
    def _():
        accr_ref[...] = jnp.zeros_like(accr_ref)

    accr_ref[...] += jnp.dot(x_ref[...], wr_ref[...],
                             preferred_element_type=jnp.float32)

    @pl.when(k == pl.num_programs(1) - 1)
    def _():
        r_ref[...] = (accr_ref[...] + b_ref[...]).astype(r_ref.dtype)


def _project_dual(x, w_l, w_r, b, tile_m, vmem_limit):
    n_pad, f_in_p = x.shape
    f_out_p = w_l.shape[1]
    tile_f = _choose_div_tile(f_in_p, _DEF_TILE_K)
    grid = (n_pad // tile_m, f_in_p // tile_f)
    return pl.pallas_call(
        _project_dual_kernel,
        out_shape=(jax.ShapeDtypeStruct((n_pad, f_out_p), jnp.bfloat16),
                   jax.ShapeDtypeStruct((n_pad, f_out_p), jnp.float32)),
        grid=grid,
        in_specs=[
            pl.BlockSpec((tile_m, tile_f), lambda i, k: (i, k)),    # X
            pl.BlockSpec((tile_f, f_out_p), lambda i, k: (k, 0)),   # W_l
            pl.BlockSpec((tile_f, f_out_p), lambda i, k: (k, 0)),   # W_r
            pl.BlockSpec((1, f_out_p), lambda i, k: (0, 0)),        # bias
        ],
        out_specs=[
            pl.BlockSpec((tile_m, f_out_p), lambda i, k: (i, 0)),   # Z
            pl.BlockSpec((tile_m, f_out_p), lambda i, k: (i, 0)),   # R
        ],
        scratch_shapes=[pltpu.VMEM((tile_m, f_out_p), jnp.float32),
                        pltpu.VMEM((tile_m, f_out_p), jnp.float32)],
        compiler_params=_cparams(vmem_limit),
    )(x, w_l, w_r, b)


def _project_single(x, w_r, b, tile_m, vmem_limit):
    n_pad, f_in_p = x.shape
    f_out_p = w_r.shape[1]
    tile_f = _choose_div_tile(f_in_p, _DEF_TILE_K)
    grid = (n_pad // tile_m, f_in_p // tile_f)
    return pl.pallas_call(
        _project_single_kernel,
        out_shape=jax.ShapeDtypeStruct((n_pad, f_out_p), jnp.float32),
        grid=grid,
        in_specs=[
            pl.BlockSpec((tile_m, tile_f), lambda i, k: (i, k)),    # X
            pl.BlockSpec((tile_f, f_out_p), lambda i, k: (k, 0)),   # W_r
            pl.BlockSpec((1, f_out_p), lambda i, k: (0, 0)),        # bias
        ],
        out_specs=pl.BlockSpec((tile_m, f_out_p), lambda i, k: (i, 0)),
        scratch_shapes=[pltpu.VMEM((tile_m, f_out_p), jnp.float32)],
        compiler_params=_cparams(vmem_limit),
    )(x, w_r, b)


# ----------------------------------------------------------------------------
# Aggregation kernels: tiled (A_binary @ .) with f32 accumulator; epilogue is
# inv_degree row scale + precomputed residual R (+ optional W_l) + ReLU.
# ----------------------------------------------------------------------------
def _sage_pre_kernel(a_ref, z_ref, d_ref, r_ref, o_ref, acc_ref, *, apply_relu):
    # acc = sum_k A_bin[i,k] @ Z[k]  (Z = X @ W_l precomputed)
    # finalize: out = acc * inv_deg[i] + R[i]  (+ ReLU)
    k = pl.program_id(1)

    @pl.when(k == 0)
    def _():
        acc_ref[...] = jnp.zeros_like(acc_ref)

    a = a_ref[...].astype(jnp.bfloat16)   # int8 edge counts -> bf16 (exact)
    acc_ref[...] += jnp.dot(a, z_ref[...], preferred_element_type=jnp.float32)

    @pl.when(k == pl.num_programs(1) - 1)
    def _():
        out = acc_ref[...] * d_ref[...] + r_ref[...]
        if apply_relu:
            out = jnp.maximum(out, 0.0)
        o_ref[...] = out.astype(o_ref.dtype)


def _sage_post_kernel(a_ref, x_ref, wl_ref, d_ref, r_ref, o_ref, acc_ref, *,
                      apply_relu):
    # acc = sum_k A_bin[i,k] @ X[k]
    # finalize: out = ((acc * inv_deg[i]).bf16 @ W_l) + R[i]  (+ ReLU)
    k = pl.program_id(1)

    @pl.when(k == 0)
    def _():
        acc_ref[...] = jnp.zeros_like(acc_ref)

    a = a_ref[...].astype(jnp.bfloat16)
    acc_ref[...] += jnp.dot(a, x_ref[...], preferred_element_type=jnp.float32)

    @pl.when(k == pl.num_programs(1) - 1)
    def _():
        agg = (acc_ref[...] * d_ref[...]).astype(jnp.bfloat16)
        out = jnp.dot(agg, wl_ref[...], preferred_element_type=jnp.float32)
        out = out + r_ref[...]
        if apply_relu:
            out = jnp.maximum(out, 0.0)
        o_ref[...] = out.astype(o_ref.dtype)


def _aggregate_pre(a, z, inv_deg, r, *, tile_m, tile_k, apply_relu, out_dtype,
                   vmem_limit):
    n_pad = a.shape[0]
    f_out_p = z.shape[1]
    grid = (n_pad // tile_m, n_pad // tile_k)
    kernel = functools.partial(_sage_pre_kernel, apply_relu=apply_relu)
    return pl.pallas_call(
        kernel,
        out_shape=jax.ShapeDtypeStruct((n_pad, f_out_p), out_dtype),
        grid=grid,
        in_specs=[
            pl.BlockSpec((tile_m, tile_k), lambda i, k: (i, k)),    # A int8
            pl.BlockSpec((tile_k, f_out_p), lambda i, k: (k, 0)),   # Z bf16
            pl.BlockSpec((tile_m, 1), lambda i, k: (i, 0)),         # inv_deg f32
            pl.BlockSpec((tile_m, f_out_p), lambda i, k: (i, 0)),   # R f32
        ],
        out_specs=pl.BlockSpec((tile_m, f_out_p), lambda i, k: (i, 0)),
        scratch_shapes=[pltpu.VMEM((tile_m, f_out_p), jnp.float32)],
        compiler_params=_cparams(vmem_limit),
    )(a, z, inv_deg, r)


def _aggregate_post(a, x, w_l, inv_deg, r, *, tile_m, tile_k, apply_relu,
                    out_dtype, vmem_limit):
    n_pad = a.shape[0]
    f_in_p = x.shape[1]
    f_out_p = w_l.shape[1]
    grid = (n_pad // tile_m, n_pad // tile_k)
    kernel = functools.partial(_sage_post_kernel, apply_relu=apply_relu)
    return pl.pallas_call(
        kernel,
        out_shape=jax.ShapeDtypeStruct((n_pad, f_out_p), out_dtype),
        grid=grid,
        in_specs=[
            pl.BlockSpec((tile_m, tile_k), lambda i, k: (i, k)),    # A int8
            pl.BlockSpec((tile_k, f_in_p), lambda i, k: (k, 0)),    # X bf16 cols
            pl.BlockSpec((f_in_p, f_out_p), lambda i, k: (0, 0)),   # W_l bf16
            pl.BlockSpec((tile_m, 1), lambda i, k: (i, 0)),         # inv_deg f32
            pl.BlockSpec((tile_m, f_out_p), lambda i, k: (i, 0)),   # R f32
        ],
        out_specs=pl.BlockSpec((tile_m, f_out_p), lambda i, k: (i, 0)),
        scratch_shapes=[pltpu.VMEM((tile_m, f_in_p), jnp.float32)],
        compiler_params=_cparams(vmem_limit),
    )(a, x, w_l, inv_deg, r)


def sage_conv_layer(a, inv_deg, x, w_l, w_r, b, *, tile_m, tile_k, apply_relu,
                    out_dtype, vmem_limit):
    """One SAGEConv layer on padded operands (int8 A, bf16 X/W, f32 accumulate)."""
    f_in_p, f_out_p = w_l.shape
    tile_m = _capped_tile_m(tile_m, tile_k, f_in_p, f_out_p, vmem_limit)
    if f_out_p <= f_in_p:
        # Pre-projection: A @ (X @ W_l); Z and R computed in one X pass.
        z, r = _project_dual(x, w_l, w_r, b, tile_m, vmem_limit)
        return _aggregate_pre(a, z, inv_deg, r, tile_m=tile_m, tile_k=tile_k,
                              apply_relu=apply_relu, out_dtype=out_dtype,
                              vmem_limit=vmem_limit)
    # Post-projection: (A @ X) @ W_l; only R precomputed.
    r = _project_single(x, w_r, b, tile_m, vmem_limit)
    return _aggregate_post(a, x, w_l, inv_deg, r, tile_m=tile_m, tile_k=tile_k,
                           apply_relu=apply_relu, out_dtype=out_dtype,
                           vmem_limit=vmem_limit)


# ----------------------------------------------------------------------------
# Graph preprocessing, parameter init, and the full SAGE forward
# ----------------------------------------------------------------------------
def preprocess_graph(edge_index, num_nodes, n_pad):
    """Compressed adjacency: int8 edge counts + f32 inverse in-degree column.

    A[i, j] = #edges j->i (exact small integers); the 1/in_degree mean
    normalization is applied as an f32 row scale inside the kernel epilogue.
    Built directly at padded size; cache the result across forward calls.
    """
    src = edge_index[0].astype(jnp.int32)
    dst = edge_index[1].astype(jnp.int32)
    counts = jnp.zeros((n_pad, n_pad), jnp.int32).at[dst, src].add(1)
    # TODO(synk): >127 parallel edges between one node pair would overflow int8.
    a = counts.astype(jnp.int8)
    deg = jnp.zeros((n_pad,), jnp.float32).at[dst].add(1.0)
    inv_deg = (1.0 / jnp.maximum(deg, 1.0)).reshape(n_pad, 1)
    return a, inv_deg


def init_sage_params(key, in_channels, hidden_channels, out_channels,
                     num_layers=2):
    dims = [in_channels] + [hidden_channels] * (num_layers - 1) + [out_channels]
    params = []
    for layer in range(num_layers):
        f_in, f_out = dims[layer], dims[layer + 1]
        key, k1, k2, k3 = jax.random.split(key, 4)
        bound = 1.0 / jnp.sqrt(jnp.float32(f_in))
        w_l = jax.random.uniform(k1, (f_in, f_out), jnp.float32, -bound, bound)
        w_r = jax.random.uniform(k2, (f_in, f_out), jnp.float32, -bound, bound)
        b = jax.random.uniform(k3, (1, f_out), jnp.float32, -bound, bound)
        params.append((w_l, w_r, b))
    return params


def sage_forward(params, x, edge_index, graph=None):
    """Full SAGE forward (inference semantics) using Pallas kernels."""
    n, f0 = x.shape
    tile_m, tile_k, n_pad = _choose_node_tiling(n)
    vmem_limit = _vmem_limit_bytes()

    if graph is None:
        graph = preprocess_graph(edge_index, n, n_pad)
    a, inv_deg = graph

    f0_p = _round_up(f0, _LANE)
    h = _pad2(x, n_pad, f0_p).astype(jnp.bfloat16)

    num_layers = len(params)
    for i, (w_l, w_r, b) in enumerate(params):
        f_in, f_out = w_l.shape
        f_in_p = _round_up(f_in, _LANE)
        f_out_p = _round_up(f_out, _LANE)
        wl_p = _pad2(w_l, f_in_p, f_out_p).astype(jnp.bfloat16)
        wr_p = _pad2(w_r, f_in_p, f_out_p).astype(jnp.bfloat16)
        b_p = _pad2(b, 1, f_out_p).astype(jnp.float32)
        last = i == num_layers - 1
        h = sage_conv_layer(
            a, inv_deg, h, wl_p, wr_p, b_p,
            tile_m=tile_m, tile_k=tile_k,
            apply_relu=not last,
            out_dtype=jnp.float32 if last else jnp.bfloat16,
            vmem_limit=vmem_limit,
        )
    # Strip node / feature padding.
    return h[:n, : params[-1][0].shape[1]]


# ----------------------------------------------------------------------------
# Pure-JAX references
# ----------------------------------------------------------------------------
def sage_forward_ref_matched(params, x, edge_index):
    """Reference replicating the kernel's numerics (bf16 operands, f32
    accumulation, binary A + f32 inv-degree scale, pre/post reassociation)."""
    n = x.shape[0]
    src, dst = edge_index[0], edge_index[1]
    a_cnt = jnp.zeros((n, n), jnp.float32).at[dst, src].add(1.0)
    deg = jnp.zeros((n,), jnp.float32).at[dst].add(1.0)
    inv_deg = (1.0 / jnp.maximum(deg, 1.0))[:, None]
    a_bf = a_cnt.astype(jnp.bfloat16)  # exact small integer counts
    h = x.astype(jnp.bfloat16)
    num_layers = len(params)
    for i, (w_l, w_r, b) in enumerate(params):
        f_in, f_out = w_l.shape
        f_in_p = _round_up(f_in, _LANE)
        f_out_p = _round_up(f_out, _LANE)
        wl = w_l.astype(jnp.bfloat16)
        wr = w_r.astype(jnp.bfloat16)
        r = jnp.dot(h, wr, preferred_element_type=jnp.float32) + b
        if f_out_p <= f_in_p:
            z = jnp.dot(h, wl, preferred_element_type=jnp.float32)
            z = z.astype(jnp.bfloat16)
            out = jnp.dot(a_bf, z, preferred_element_type=jnp.float32)
            out = out * inv_deg + r
        else:
            agg = jnp.dot(a_bf, h, preferred_element_type=jnp.float32)
            agg = (agg * inv_deg).astype(jnp.bfloat16)
            out = jnp.dot(agg, wl, preferred_element_type=jnp.float32) + r
        if i < num_layers - 1:
            out = jnp.maximum(out, 0.0)
            h = out.astype(jnp.bfloat16)
        else:
            h = out
    return h


def sage_forward_ref_f32(params, x, edge_index):
    """Exact (f32) PyG-semantics reference."""
    n = x.shape[0]
    src, dst = edge_index[0], edge_index[1]
    a = jnp.zeros((n, n), jnp.float32).at[dst, src].add(1.0)
    deg = a.sum(axis=1, keepdims=True)
    a = a / jnp.where(deg > 0.0, deg, 1.0)
    num_layers = len(params)
    for i, (w_l, w_r, b) in enumerate(params):
        x = (a @ x) @ w_l + x @ w_r + b
        if i < num_layers - 1:
            x = jnp.maximum(x, 0.0)
    return x


if __name__ == "__main__":
    key = jax.random.PRNGKey(0)

    def run_case(key, num_nodes, num_edges, in_c, hid_c, out_c, check_f32):
        key, kx, ks, kd, kp = jax.random.split(key, 5)
        x = jax.random.normal(kx, (num_nodes, in_c), jnp.float32)
        src = jax.random.randint(ks, (num_edges,), 0, num_nodes, jnp.int32)
        dst = jax.random.randint(kd, (num_edges,), 0, num_nodes, jnp.int32)
        edge_index = jnp.stack([src, dst], axis=0)  # (2, E), PyG convention
        params = init_sage_params(kp, in_c, hid_c, out_c, num_layers=2)

        out = jax.block_until_ready(sage_forward(params, x, edge_index))
        assert out.shape == (num_nodes, out_c)

        ref_m = sage_forward_ref_matched(params, x, edge_index)
        err_m = float(jnp.max(jnp.abs(out - ref_m)))
        assert jnp.allclose(out, ref_m, atol=2e-3, rtol=2e-3), err_m

        if check_f32:
            ref_f = sage_forward_ref_f32(params, x, edge_index)
            err_f = float(jnp.max(jnp.abs(out - ref_f)))
            assert jnp.allclose(out, ref_f, atol=5e-2, rtol=5e-2), err_f
        return key

    # Small case (exercises both the pre- and post-projection paths:
    # layer 1: 4 -> 256 is post-projection, layer 2: 256 -> 16 is pre-projection).
    key = run_case(key, num_nodes=16, num_edges=40,
                   in_c=4, hid_c=256, out_c=16, check_f32=True)

    # Medium case: multiple row tiles AND multiple reduction tiles, so the
    # f32-accumulator init/finalize path with decoupled tile_m/tile_k runs.
    key = run_case(key, num_nodes=1200, num_edges=4800,
                   in_c=64, hid_c=192, out_c=48, check_f32=False)

    print("KERNEL_OK")
</pallas_src>

<mosaic_0001>
module attributes {stable_mosaic.version = 11 : i64} {
  func.func @_project_single_kernel(%arg0: i32, %arg1: i32, %arg2: memref<128x128xbf16, #tpu.memory_space<vmem>>, %arg3: memref<128x256xbf16, #tpu.memory_space<vmem>>, %arg4: memref<1x256xf32, #tpu.memory_space<vmem>>, %arg5: memref<128x256xf32, #tpu.memory_space<vmem>>, %arg6: memref<128x256xf32, #tpu.memory_space<vmem>>) attributes {dimension_semantics = [#tpu.dimension_semantics<parallel>, #tpu.dimension_semantics<arbitrary>], iteration_bounds = array<i64: 1, 1>, scalar_prefetch = 0 : i64, scratch_operands = 1 : i64, tpu.core_type = #tpu.core_type<tc>, window_params = [{transform_indices = @transform_0, window_bounds = array<i64: 128, 128>}, {transform_indices = @transform_1, window_bounds = array<i64: 128, 256>}, {pipeline_mode = #tpu.pipeline_mode<synchronous>, transform_indices = @transform_2, window_bounds = array<i64: 1, 256>}, {transform_indices = @transform_3, window_bounds = array<i64: 128, 256>}]} {
    %c0_i32 = arith.constant 0 : i32
    %0 = arith.cmpi eq, %arg1, %c0_i32 : i32
    %1 = arith.extui %0 : i1 to i32
    %c0_i32_0 = arith.constant 0 : i32
    %2 = arith.cmpi ne, %1, %c0_i32_0 : i32
    scf.if %2 {
      %cst_10 = arith.constant 0.000000e+00 : f32
      %12 = vector.broadcast %cst_10 : f32 to vector<128x256xf32>
      %c0_11 = arith.constant 0 : index
      %c0_12 = arith.constant 0 : index
      %13 = vector.load %arg6[%c0_11, %c0_12] : memref<128x256xf32, #tpu.memory_space<vmem>>, vector<128x256xf32>
      tpu.vector_store %arg6[%c0_11, %c0_12], %12 {strides = array<i32>} : memref<128x256xf32, #tpu.memory_space<vmem>>, vector<128x256xf32>,
    } else {
    }
    %c0 = arith.constant 0 : index
    %c0_1 = arith.constant 0 : index
    %3 = vector.load %arg6[%c0, %c0_1] : memref<128x256xf32, #tpu.memory_space<vmem>>, vector<128x256xf32>
    %c0_2 = arith.constant 0 : index
    %c0_3 = arith.constant 0 : index
    %4 = vector.load %arg2[%c0_2, %c0_3] : memref<128x128xbf16, #tpu.memory_space<vmem>>, vector<128x128xbf16>
    %c0_4 = arith.constant 0 : index
    %c0_5 = arith.constant 0 : index
    %5 = vector.load %arg3[%c0_4, %c0_5] : memref<128x256xbf16, #tpu.memory_space<vmem>>, vector<128x256xbf16>
    %cst = arith.constant dense<0.000000e+00> : vector<128x256xf32>
    %6 = tpu.matmul %4, %5, %cst {dimension_numbers = #tpu.dot_dimension_numbers<[1], [0], [0], [1], [0, 0, 1, 1], [], []>} : vector<128x128xbf16>, vector<128x256xbf16>, vector<128x256xf32> -> vector<128x256xf32>
    %7 = arith.addf %3, %6 : vector<128x256xf32>
    %c0_6 = arith.constant 0 : index
    %c0_7 = arith.constant 0 : index
    %8 = vector.load %arg6[%c0_6, %c0_7] : memref<128x256xf32, #tpu.memory_space<vmem>>, vector<128x256xf32>
    tpu.vector_store %arg6[%c0_6, %c0_7], %7 {strides = array<i32>} : memref<128x256xf32, #tpu.memory_space<vmem>>, vector<128x256xf32>,
    %c0_i32_8 = arith.constant 0 : i32
    %9 = arith.cmpi eq, %arg1, %c0_i32_8 : i32
    %10 = arith.extui %9 : i1 to i32
    %c0_i32_9 = arith.constant 0 : i32
    %11 = arith.cmpi ne, %10, %c0_i32_9 : i32
    scf.if %11 {
      %c0_10 = arith.constant 0 : index
      %c0_11 = arith.constant 0 : index
      %12 = vector.load %arg6[%c0_10, %c0_11] : memref<128x256xf32, #tpu.memory_space<vmem>>, vector<128x256xf32>
      %c0_12 = arith.constant 0 : index
      %c0_13 = arith.constant 0 : index
      %13 = vector.load %arg4[%c0_12, %c0_13] : memref<1x256xf32, #tpu.memory_space<vmem>>, vector<1x256xf32>
      %14 = vector.broadcast %13 : vector<1x256xf32> to vector<128x256xf32>
      %15 = arith.addf %12, %14 : vector<128x256xf32>
      %c0_14 = arith.constant 0 : index
      %c0_15 = arith.constant 0 : index
      %16 = vector.load %arg5[%c0_14, %c0_15] : memref<128x256xf32, #tpu.memory_space<vmem>>, vector<128x256xf32>
      tpu.vector_store %arg5[%c0_14, %c0_15], %15 {strides = array<i32>} : memref<128x256xf32, #tpu.memory_space<vmem>>, vector<128x256xf32>,
    } else {
    }
    return
  }
  func.func @transform_0(%arg0: i32, %arg1: i32) -> (i32, i32) {
    %c0_i32 = arith.constant 0 : i32
    return %arg0, %arg1 : i32, i32
  }
  func.func @transform_1(%arg0: i32, %arg1: i32) -> (i32, i32) {
    %c0_i32 = arith.constant 0 : i32
    %c0_i32_0 = arith.constant 0 : i32
    return %arg1, %c0_i32 : i32, i32
  }
  func.func @transform_2(%arg0: i32, %arg1: i32) -> (i32, i32) {
    %c0_i32 = arith.constant 0 : i32
    %c0_i32_0 = arith.constant 0 : i32
    %c0_i32_1 = arith.constant 0 : i32
    return %c0_i32, %c0_i32_0 : i32, i32
  }
  func.func @transform_3(%arg0: i32, %arg1: i32) -> (i32, i32) {
    %c0_i32 = arith.constant 0 : i32
    %c0_i32_0 = arith.constant 0 : i32
    return %arg0, %c0_i32 : i32, i32
  }
}

</mosaic_0001>

<llo_original>
// kernel: tpu_custom_call.1
$region0: #{tpu_custom_call.1}
  #allocation0 [shape = 'u32[]', space=smem, size = 0x4, offset = 0x4, fixed_abs, tag = 'smem constant byte address 0x4 - core index']
  #allocation1 [shape = 'u32[144,128]{1,0:T(1,128)}', space=vmem, size = 0x12000, scoped, tag = 'internal scratch']
  #allocation2 [shape = 'f32[128,256]{1,0:T(8,128)}', space=vmem, size = 0x20000, scoped, tag = 'scratch operand']
  %s0 = inlined_call_operand.hbm [shape: bf16[128,128], index: 0, kind: input, shape index: {}]
  %s1 = inlined_call_operand.hbm [shape: bf16[128,256], index: 1, kind: input, shape index: {}]
  %s2 = inlined_call_operand.vmem [shape: f32[1,256], index: 2, kind: input, shape index: {}]
  %s3 = inlined_call_operand.hbm [shape: f32[128,256], index: 3, kind: output, shape index: {}]
  %s4 = sld [smem:[#allocation0]]
  $region38: #{tpu_custom_call.1} parent=0
    _
  %s6 = ssub.s32 1, %s4
  %s7 = scalar_select 0, %s6, %s4
  $region1: #{tpu_custom_call.1} parent=0
    #allocation3 [shape = 'u8[32768]{0}', space=vmem, size = 0x8000, scoped, tag = 'input window, operand 0, single buffered']
    #allocation4 [shape = 's32[1]{0}', space=sflag, size = 0x4, scoped, tag = 'scoped memory for tpu_custom_call.1']
    #allocation5 [shape = 's32[1]{0}', space=sflag, size = 0x4, scoped, tag = 'scoped memory for tpu_custom_call.1']
    #allocation6 [shape = 'u8[65536]{0}', space=vmem, size = 0x10000, scoped, tag = 'input window, operand 1, single buffered']
    #allocation7 [shape = 's32[1]{0}', space=sflag, size = 0x4, scoped, tag = 'scoped memory for tpu_custom_call.1']
    #allocation8 [shape = 'u8[131072]{0}', space=vmem, size = 0x20000, scoped, tag = 'output window, operand 0, single buffered']
    %8 = vsyncpa [#allocation4], 0
    %9 = vsyncpa [#allocation7], 0
    %10 = vsyncpa [#allocation5], 0
    // Predicated region
    $region2: #{tpu_custom_call.1} parent=1 // pred_check
      _
    $region3: #{tpu_custom_call.1} parent=1 // pred_check_branch
      %12 = sbr.rel (0) target = $region5
    $region4: #{tpu_custom_call.1} parent=1 // pred_region
      %s14 = ssub.s32 1024, 1024
      %15 = vsyncadd [#allocation4], %s14
      %s16 = sshll.u32 [#allocation3], 4
      %s17 = int_to_ptr.vmem [resolvable:$true] %s16
      %22 = dma.hbm_to_vmem [thread:$0]  %s0, 1024, %s17, [#allocation4], 64, 64, 4
    $region5: #{tpu_custom_call.1} parent=1 // pred_fallthru
      _
    // Predicated region
    $region6: #{tpu_custom_call.1} parent=1 // pred_check
      _
    $region7: #{tpu_custom_call.1} parent=1 // pred_check_branch
      %24 = sbr.rel (0) target = $region9
    $region8: #{tpu_custom_call.1} parent=1 // pred_region
      %s26 = ssub.s32 2048, 2048
      %27 = vsyncadd [#allocation7], %s26
      %s28 = sshll.u32 [#allocation6], 4
      %s29 = int_to_ptr.vmem [resolvable:$true] %s28
      %34 = dma.hbm_to_vmem [thread:$0]  %s1, 2048, %s29, [#allocation7], 128, 128, 8
    $region9: #{tpu_custom_call.1} parent=1 // pred_fallthru
      _
    // Predicated region
    $region10: #{tpu_custom_call.1} parent=1 // pred_check
      _
    $region11: #{tpu_custom_call.1} parent=1 // pred_check_branch
      %36 = sbr.rel (0) target = $region13
    $region12: #{tpu_custom_call.1} parent=1 // pred_region
      _
    $region13: #{tpu_custom_call.1} parent=1 // pred_fallthru
      _
    // Predicated region
    $region14: #{tpu_custom_call.1} parent=1 // pred_check
      _
    $region15: #{tpu_custom_call.1} parent=1 // pred_check_branch
      %38 = sbr.rel (0) target = $region17
    $region16: #{tpu_custom_call.1} parent=1 // pred_region
      %39 = dma.done [#allocation4], 1024
    $region17: #{tpu_custom_call.1} parent=1 // pred_fallthru
      _
    // Predicated region
    $region18: #{tpu_custom_call.1} parent=1 // pred_check
      _
    $region19: #{tpu_custom_call.1} parent=1 // pred_check_branch
      %41 = sbr.rel (0) target = $region21
    $region20: #{tpu_custom_call.1} parent=1 // pred_region
      %42 = dma.done [#allocation7], 2048
    $region21: #{tpu_custom_call.1} parent=1 // pred_fallthru
      _
    %p44 = scmp.eq.s32.totalorder 0, 0
    // Predicated region
    $region22: #{tpu_custom_call.1} parent=1 // pred_check
      %p45 = pneg %p44
    $region23: #{tpu_custom_call.1} parent=1 // pred_check_branch
      %47 = sbr.rel (%p45) target = $region25
    $region24: #{tpu_custom_call.1} parent=1 // pred_region
      %48 = vst [vmem:[#allocation2] sm:$0xff] 0.0
      %49 = vst [vmem:[#allocation2 + $0x8] sm:$0xff] 0.0
      %50 = vst [vmem:[#allocation2 + $0x10] sm:$0xff] 0.0
      %51 = vst [vmem:[#allocation2 + $0x18] sm:$0xff] 0.0
      %52 = vst [vmem:[#allocation2 + $0x20] sm:$0xff] 0.0
      %53 = vst [vmem:[#allocation2 + $0x28] sm:$0xff] 0.0
      %54 = vst [vmem:[#allocation2 + $0x30] sm:$0xff] 0.0
      %55 = vst [vmem:[#allocation2 + $0x38] sm:$0xff] 0.0
      %56 = vst [vmem:[#allocation2 + $0x40] sm:$0xff] 0.0
      %57 = vst [vmem:[#allocation2 + $0x48] sm:$0xff] 0.0
      %58 = vst [vmem:[#allocation2 + $0x50] sm:$0xff] 0.0
      %59 = vst [vmem:[#allocation2 + $0x58] sm:$0xff] 0.0
      %60 = vst [vmem:[#allocation2 + $0x60] sm:$0xff] 0.0
      %61 = vst [vmem:[#allocation2 + $0x68] sm:$0xff] 0.0
      %62 = vst [vmem:[#allocation2 + $0x70] sm:$0xff] 0.0
      %63 = vst [vmem:[#allocation2 + $0x78] sm:$0xff] 0.0
      %64 = vst [vmem:[#allocation2 + $0x80] sm:$0xff] 0.0
      %65 = vst [vmem:[#allocation2 + $0x88] sm:$0xff] 0.0
      %66 = vst [vmem:[#allocation2 + $0x90] sm:$0xff] 0.0
      %67 = vst [vmem:[#allocation2 + $0x98] sm:$0xff] 0.0
      %68 = vst [vmem:[#allocation2 + $0xa0] sm:$0xff] 0.0
      %69 = vst [vmem:[#allocation2 + $0xa8] sm:$0xff] 0.0
      %70 = vst [vmem:[#allocation2 + $0xb0] sm:$0xff] 0.0
      %71 = vst [vmem:[#allocation2 + $0xb8] sm:$0xff] 0.0
      %72 = vst [vmem:[#allocation2 + $0xc0] sm:$0xff] 0.0
      %73 = vst [vmem:[#allocation2 + $0xc8] sm:$0xff] 0.0
      %74 = vst [vmem:[#allocation2 + $0xd0] sm:$0xff] 0.0
      %75 = vst [vmem:[#allocation2 + $0xd8] sm:$0xff] 0.0
      %76 = vst [vmem:[#allocation2 + $0xe0] sm:$0xff] 0.0
      %77 = vst [vmem:[#allocation2 + $0xe8] sm:$0xff] 0.0
      %78 = vst [vmem:[#allocation2 + $0xf0] sm:$0xff] 0.0
      %79 = vst [vmem:[#allocation2 + $0xf8] sm:$0xff] 0.0
    $region25: #{tpu_custom_call.1} parent=1 // pred_fallthru
      _
    %v80 = vld [vmem:[#allocation2] sm:$0xff]
    %v81 = vld [vmem:[#allocation2 + $0x8] sm:$0xff]
    %v82 = vld [vmem:[#allocation2 + $0x10] sm:$0xff]
    %v83 = vld [vmem:[#allocation2 + $0x18] sm:$0xff]
    %v84 = vld [vmem:[#allocation2 + $0x20] sm:$0xff]
    %v85 = vld [vmem:[#allocation2 + $0x28] sm:$0xff]
    %v86 = vld [vmem:[#allocation2 + $0x30] sm:$0xff]
    %v87 = vld [vmem:[#allocation2 + $0x38] sm:$0xff]
    %v88 = vld [vmem:[#allocation2 + $0x40] sm:$0xff]
    %v89 = vld [vmem:[#allocation2 + $0x48] sm:$0xff]
    %v90 = vld [vmem:[#allocation2 + $0x50] sm:$0xff]
    %v91 = vld [vmem:[#allocation2 + $0x58] sm:$0xff]
    %v92 = vld [vmem:[#allocation2 + $0x60] sm:$0xff]
    %v93 = vld [vmem:[#allocation2 + $0x68] sm:$0xff]
    %v94 = vld [vmem:[#allocation2 + $0x70] sm:$0xff]
    %v95 = vld [vmem:[#allocation2 + $0x78] sm:$0xff]
    %v96 = vld [vmem:[#allocation2 + $0x80] sm:$0xff]
    %v97 = vld [vmem:[#allocation2 + $0x88] sm:$0xff]
    %v98 = vld [vmem:[#allocation2 + $0x90] sm:$0xff]
    %v99 = vld [vmem:[#allocation2 + $0x98] sm:$0xff]
    %v100 = vld [vmem:[#allocation2 + $0xa0] sm:$0xff]
    %v101 = vld [vmem:[#allocation2 + $0xa8] sm:$0xff]
    %v102 = vld [vmem:[#allocation2 + $0xb0] sm:$0xff]
    %v103 = vld [vmem:[#allocation2 + $0xb8] sm:$0xff]
    %v104 = vld [vmem:[#allocation2 + $0xc0] sm:$0xff]
    %v105 = vld [vmem:[#allocation2 + $0xc8] sm:$0xff]
    %v106 = vld [vmem:[#allocation2 + $0xd0] sm:$0xff]
    %v107 = vld [vmem:[#allocation2 + $0xd8] sm:$0xff]
    %v108 = vld [vmem:[#allocation2 + $0xe0] sm:$0xff]
    %v109 = vld [vmem:[#allocation2 + $0xe8] sm:$0xff]
    %v110 = vld [vmem:[#allocation2 + $0xf0] sm:$0xff]
    %v111 = vld [vmem:[#allocation2 + $0xf8] sm:$0xff]
    %v112 = vld [vmem:[#allocation3] sm:$0xf]
    %v113 = vld [vmem:[#allocation3 + $0x4] sm:$0xf]
    %v114 = vld [vmem:[#allocation3 + $0x8] sm:$0xf]
    %v115 = vld [vmem:[#allocation3 + $0xc] sm:$0xf]
    %v116 = vld [vmem:[#allocation3 + $0x10] sm:$0xf]
    %v117 = vld [vmem:[#allocation3 + $0x14] sm:$0xf]
    %v118 = vld [vmem:[#allocation3 + $0x18] sm:$0xf]
    %v119 = vld [vmem:[#allocation3 + $0x1c] sm:$0xf]
    %v120 = vld [vmem:[#allocation3 + $0x20] sm:$0xf]
    %v121 = vld [vmem:[#allocation3 + $0x24] sm:$0xf]
    %v122 = vld [vmem:[#allocation3 + $0x28] sm:$0xf]
    %v123 = vld [vmem:[#allocation3 + $0x2c] sm:$0xf]
    %v124 = vld [vmem:[#allocation3 + $0x30] sm:$0xf]
    %v125 = vld [vmem:[#allocation3 + $0x34] sm:$0xf]
    %v126 = vld [vmem:[#allocation3 + $0x38] sm:$0xf]
    %v127 = vld [vmem:[#allocation3 + $0x3c] sm:$0xf]
    %v128 = vld [vmem:[#allocation6] sm:$0xff]
    %v129 = vld [vmem:[#allocation6 + $0x8] sm:$0xff]
    %v130 = vld [vmem:[#allocation6 + $0x10] sm:$0xff]
    %v131 = vld [vmem:[#allocation6 + $0x18] sm:$0xff]
    %v132 = vld [vmem:[#allocation6 + $0x20] sm:$0xff]
    %v133 = vld [vmem:[#allocation6 + $0x28] sm:$0xff]
    %v134 = vld [vmem:[#allocation6 + $0x30] sm:$0xff]
    %v135 = vld [vmem:[#allocation6 + $0x38] sm:$0xff]
    %v136 = vld [vmem:[#allocation6 + $0x40] sm:$0xff]
    %v137 = vld [vmem:[#allocation6 + $0x48] sm:$0xff]
    %v138 = vld [vmem:[#allocation6 + $0x50] sm:$0xff]
    %v139 = vld [vmem:[#allocation6 + $0x58] sm:$0xff]
    %v140 = vld [vmem:[#allocation6 + $0x60] sm:$0xff]
    %v141 = vld [vmem:[#allocation6 + $0x68] sm:$0xff]
    %v142 = vld [vmem:[#allocation6 + $0x70] sm:$0xff]
    %v143 = vld [vmem:[#allocation6 + $0x78] sm:$0xff]
    %v160 = vunpack.c.l.b16 %v112
    %v161 = vunpack.c.l.b16 %v113
    %v162 = vunpack.c.l.b16 %v114
    %v163 = vunpack.c.l.b16 %v115
    %v164 = vunpack.c.l.b16 %v116
    %v165 = vunpack.c.l.b16 %v117
    %v166 = vunpack.c.l.b16 %v118
    %v167 = vunpack.c.l.b16 %v119
    %v168 = vunpack.c.l.b16 %v120
    %v169 = vunpack.c.l.b16 %v121
    %v170 = vunpack.c.l.b16 %v122
    %v171 = vunpack.c.l.b16 %v123
    %v172 = vunpack.c.l.b16 %v124
    %v173 = vunpack.c.l.b16 %v125
    %v174 = vunpack.c.l.b16 %v126
    %v175 = vunpack.c.l.b16 %v127
    %v176 = vpack.c.b16 %v161, %v160
    %v177 = vpack.c.b16 %v163, %v162
    %v178 = vpack.c.b16 %v165, %v164
    %v179 = vpack.c.b16 %v167, %v166
    %v180 = vpack.c.b16 %v169, %v168
    %v181 = vpack.c.b16 %v171, %v170
    %v182 = vpack.c.b16 %v173, %v172
    %v183 = vpack.c.b16 %v175, %v174
    %v208 = vunpack.c.l.b16 %v128
    %v209 = vunpack.c.h.b16 %v128
    %v210 = vunpack.c.l.b16 %v129
    %v211 = vunpack.c.h.b16 %v129
    %v212 = vunpack.c.l.b16 %v130
    %v213 = vunpack.c.h.b16 %v130
    %v214 = vunpack.c.l.b16 %v131
    %v215 = vunpack.c.h.b16 %v131
    %v216 = vunpack.c.l.b16 %v132
    %v217 = vunpack.c.h.b16 %v132
    %v218 = vunpack.c.l.b16 %v133
    %v219 = vunpack.c.h.b16 %v133
    %v220 = vunpack.c.l.b16 %v134
    %v221 = vunpack.c.h.b16 %v134
    %v222 = vunpack.c.l.b16 %v135
    %v223 = vunpack.c.h.b16 %v135
    %v224 = vunpack.c.l.b16 %v136
    %v225 = vunpack.c.h.b16 %v136
    %v226 = vunpack.c.l.b16 %v137
    %v227 = vunpack.c.h.b16 %v137
    %v228 = vunpack.c.l.b16 %v138
    %v229 = vunpack.c.h.b16 %v138
    %v230 = vunpack.c.l.b16 %v139
    %v231 = vunpack.c.h.b16 %v139
    %v232 = vunpack.c.l.b16 %v140
    %v233 = vunpack.c.h.b16 %v140
    %v234 = vunpack.c.l.b16 %v141
    %v235 = vunpack.c.h.b16 %v141
    %v236 = vunpack.c.l.b16 %v142
    %v237 = vunpack.c.h.b16 %v142
    %v238 = vunpack.c.l.b16 %v143
    %v239 = vunpack.c.h.b16 %v143
    %v240 = vpack.c.b16 %v210, %v208
    %v241 = vpack.c.b16 %v211, %v209
    %v242 = vpack.c.b16 %v214, %v212
    %v243 = vpack.c.b16 %v215, %v213
    %v244 = vpack.c.b16 %v218, %v216
    %v245 = vpack.c.b16 %v219, %v217
    %v246 = vpack.c.b16 %v222, %v220
    %v247 = vpack.c.b16 %v223, %v221
    %v248 = vpack.c.b16 %v226, %v224
    %v249 = vpack.c.b16 %v227, %v225
    %v250 = vpack.c.b16 %v230, %v228
    %v251 = vpack.c.b16 %v231, %v229
    %v252 = vpack.c.b16 %v234, %v232
    %v253 = vpack.c.b16 %v235, %v233
    %v254 = vpack.c.b16 %v238, %v236
    %v255 = vpack.c.b16 %v239, %v237
    %272 = vmatprep.subr.bf16.mxu0 %v241
    %273 = vmatpush1.bf16.msra.mxu0 %v240
    %274 = vmatprep.subr.bf16.mxu0 %v243
    %275 = vmatpush1.bf16.msra.mxu0 %v242
    %276 = vmatprep.subr.bf16.mxu0 %v245
    %277 = vmatpush1.bf16.msra.mxu0 %v244
    %278 = vmatprep.subr.bf16.mxu0 %v247
    %279 = vmatpush1.bf16.msra.mxu0 %v246
    %280 = vmatprep.subr.bf16.mxu0 %v249
    %281 = vmatpush1.bf16.msra.mxu0 %v248
    %282 = vmatprep.subr.bf16.mxu0 %v251
    %283 = vmatpush1.bf16.msra.mxu0 %v250
    %284 = vmatprep.subr.bf16.mxu0 %v253
    %285 = vmatpush1.bf16.msra.mxu0 %v252
    %286 = vmatprep.subr.bf16.mxu0 %v255
    %287 = vmatpush1.bf16.msra.mxu0 %v254
    %288 = vmatprep.subr.bf16.mxu0 0
    %289 = vmatpush1.bf16.msra.mxu0 0
    %290 = vmatprep.subr.bf16.mxu0 0
    %291 = vmatpush1.bf16.msra.mxu0 0
    %292 = vmatprep.subr.bf16.mxu0 0
    %293 = vmatpush1.bf16.msra.mxu0 0
    %294 = vmatprep.subr.bf16.mxu0 0
    %295 = vmatpush1.bf16.msra.mxu0 0
    %296 = vmatprep.subr.bf16.mxu0 0
    %297 = vmatpush1.bf16.msra.mxu0 0
    %298 = vmatprep.subr.bf16.mxu0 0
    %299 = vmatpush1.bf16.msra.mxu0 0
    %300 = vmatprep.subr.bf16.mxu0 0
    %301 = vmatpush1.bf16.msra.mxu0 0
    %302 = vmatprep.subr.bf16.mxu0 0
    %303 = vmatpush1.bf16.msra.mxu0 0
    %304 = vmatprep.mubr.bf16.mxu0 0
    %305 = vmatmul.mubr.bf16.gmra.mrb[0].mxu0 %v176
    %v306 = vpop.f32.mrb[0].mxu0
    %v307 = vadd.f32 0.0, %v306
    %v308 = vpop.f32.mrb[0].mxu0
    %v309 = vadd.f32 0.0, %v308
    %v310 = vpop.f32.mrb[0].mxu0
    %v311 = vadd.f32 0.0, %v310
    %v312 = vpop.f32.mrb[0].mxu0
    %v313 = vadd.f32 0.0, %v312
    %314 = vmatprep.mubr.bf16.mxu0 0
    %315 = vmatmul.mubr.bf16.gmra.mrb[0].mxu0 %v177
    %v316 = vpop.f32.mrb[0].mxu0
    %v317 = vadd.f32 0.0, %v316
    %v318 = vpop.f32.mrb[0].mxu0
    %v319 = vadd.f32 0.0, %v318
    %v320 = vpop.f32.mrb[0].mxu0
    %v321 = vadd.f32 0.0, %v320
    %v322 = vpop.f32.mrb[0].mxu0
    %v323 = vadd.f32 0.0, %v322
    %324 = vmatprep.mubr.bf16.mxu0 0
    %325 = vmatmul.mubr.bf16.gmra.mrb[0].mxu0 %v178
    %v326 = vpop.f32.mrb[0].mxu0
    %v327 = vadd.f32 0.0, %v326
    %v328 = vpop.f32.mrb[0].mxu0
    %v329 = vadd.f32 0.0, %v328
    %v330 = vpop.f32.mrb[0].mxu0
    %v331 = vadd.f32 0.0, %v330
    %v332 = vpop.f32.mrb[0].mxu0
    %v333 = vadd.f32 0.0, %v332
    %334 = vmatprep.mubr.bf16.mxu0 0
    %335 = vmatmul.mubr.bf16.gmra.mrb[0].mxu0 %v179
    %v336 = vpop.f32.mrb[0].mxu0
    %v337 = vadd.f32 0.0, %v336
    %v338 = vpop.f32.mrb[0].mxu0
    %v339 = vadd.f32 0.0, %v338
    %v340 = vpop.f32.mrb[0].mxu0
    %v341 = vadd.f32 0.0, %v340
    %v342 = vpop.f32.mrb[0].mxu0
    %v343 = vadd.f32 0.0, %v342
    %344 = vmatprep.mubr.bf16.mxu0 0
    %345 = vmatmul.mubr.bf16.gmra.mrb[0].mxu0 %v180
    %v346 = vpop.f32.mrb[0].mxu0
    %v347 = vadd.f32 0.0, %v346
    %v348 = vpop.f32.mrb[0].mxu0
    %v349 = vadd.f32 0.0, %v348
    %v350 = vpop.f32.mrb[0].mxu0
    %v351 = vadd.f32 0.0, %v350
    %v352 = vpop.f32.mrb[0].mxu0
    %v353 = vadd.f32 0.0, %v352
    %354 = vmatprep.mubr.bf16.mxu0 0
    %355 = vmatmul.mubr.bf16.gmra.mrb[0].mxu0 %v181
    %v356 = vpop.f32.mrb[0].mxu0
    %v357 = vadd.f32 0.0, %v356
    %v358 = vpop.f32.mrb[0].mxu0
    %v359 = vadd.f32 0.0, %v358
    %v360 = vpop.f32.mrb[0].mxu0
    %v361 = vadd.f32 0.0, %v360
    %v362 = vpop.f32.mrb[0].mxu0
    %v363 = vadd.f32 0.0, %v362
    %364 = vmatprep.mubr.bf16.mxu0 0
    %365 = vmatmul.mubr.bf16.gmra.mrb[0].mxu0 %v182
    %v366 = vpop.f32.mrb[0].mxu0
    %v367 = vadd.f32 0.0, %v366
    %v368 = vpop.f32.mrb[0].mxu0
    %v369 = vadd.f32 0.0, %v368
    %v370 = vpop.f32.mrb[0].mxu0
    %v371 = vadd.f32 0.0, %v370
    %v372 = vpop.f32.mrb[0].mxu0
    %v373 = vadd.f32 0.0, %v372
    %374 = vmatprep.mubr.bf16.mxu0 0
    %375 = vmatmul.mubr.bf16.gmra.mrb[0].mxu0 %v183
    %v376 = vpop.f32.mrb[0].mxu0
    %v377 = vadd.f32 0.0, %v376
    %v378 = vpop.f32.mrb[0].mxu0
    %v379 = vadd.f32 0.0, %v378
    %v380 = vpop.f32.mrb[0].mxu0
    %v381 = vadd.f32 0.0, %v380
    %v382 = vpop.f32.mrb[0].mxu0
    %v383 = vadd.f32 0.0, %v382
    %384 = vdwg.mxu0
    %v385 = vadd.f32 %v80, %v307
    %v386 = vadd.f32 %v81, %v309
    %v387 = vadd.f32 %v82, %v311
    %v388 = vadd.f32 %v83, %v313
    %v389 = vadd.f32 %v84, %v317
    %v390 = vadd.f32 %v85, %v319
    %v391 = vadd.f32 %v86, %v321
    %v392 = vadd.f32 %v87, %v323
    %v393 = vadd.f32 %v88, %v327
    %v394 = vadd.f32 %v89, %v329
    %v395 = vadd.f32 %v90, %v331
    %v396 = vadd.f32 %v91, %v333
    %v397 = vadd.f32 %v92, %v337
    %v398 = vadd.f32 %v93, %v339
    %v399 = vadd.f32 %v94, %v341
    %v400 = vadd.f32 %v95, %v343
    %v401 = vadd.f32 %v96, %v347
    %v402 = vadd.f32 %v97, %v349
    %v403 = vadd.f32 %v98, %v351
    %v404 = vadd.f32 %v99, %v353
    %v405 = vadd.f32 %v100, %v357
    %v406 = vadd.f32 %v101, %v359
    %v407 = vadd.f32 %v102, %v361
    %v408 = vadd.f32 %v103, %v363
    %v409 = vadd.f32 %v104, %v367
    %v410 = vadd.f32 %v105, %v369
    %v411 = vadd.f32 %v106, %v371
    %v412 = vadd.f32 %v107, %v373
    %v413 = vadd.f32 %v108, %v377
    %v414 = vadd.f32 %v109, %v379
    %v415 = vadd.f32 %v110, %v381
    %v416 = vadd.f32 %v111, %v383
    %417 = vst [vmem:[#allocation2] sm:$0xff] %v385
    %418 = vst [vmem:[#allocation2 + $0x8] sm:$0xff] %v386
    %419 = vst [vmem:[#allocation2 + $0x10] sm:$0xff] %v387
    %420 = vst [vmem:[#allocation2 + $0x18] sm:$0xff] %v388
    %421 = vst [vmem:[#allocation2 + $0x20] sm:$0xff] %v389
    %422 = vst [vmem:[#allocation2 + $0x28] sm:$0xff] %v390
    %423 = vst [vmem:[#allocation2 + $0x30] sm:$0xff] %v391
    %424 = vst [vmem:[#allocation2 + $0x38] sm:$0xff] %v392
    %425 = vst [vmem:[#allocation2 + $0x40] sm:$0xff] %v393
    %426 = vst [vmem:[#allocation2 + $0x48] sm:$0xff] %v394
    %427 = vst [vmem:[#allocation2 + $0x50] sm:$0xff] %v395
    %428 = vst [vmem:[#allocation2 + $0x58] sm:$0xff] %v396
    %429 = vst [vmem:[#allocation2 + $0x60] sm:$0xff] %v397
    %430 = vst [vmem:[#allocation2 + $0x68] sm:$0xff] %v398
    %431 = vst [vmem:[#allocation2 + $0x70] sm:$0xff] %v399
    %432 = vst [vmem:[#allocation2 + $0x78] sm:$0xff] %v400
    %433 = vst [vmem:[#allocation2 + $0x80] sm:$0xff] %v401
    %434 = vst [vmem:[#allocation2 + $0x88] sm:$0xff] %v402
    %435 = vst [vmem:[#allocation2 + $0x90] sm:$0xff] %v403
    %436 = vst [vmem:[#allocation2 + $0x98] sm:$0xff] %v404
    %437 = vst [vmem:[#allocation2 + $0xa0] sm:$0xff] %v405
    %438 = vst [vmem:[#allocation2 + $0xa8] sm:$0xff] %v406
    %439 = vst [vmem:[#allocation2 + $0xb0] sm:$0xff] %v407
    %440 = vst [vmem:[#allocation2 + $0xb8] sm:$0xff] %v408
    %441 = vst [vmem:[#allocation2 + $0xc0] sm:$0xff] %v409
    %442 = vst [vmem:[#allocation2 + $0xc8] sm:$0xff] %v410
    %443 = vst [vmem:[#allocation2 + $0xd0] sm:$0xff] %v411
    %444 = vst [vmem:[#allocation2 + $0xd8] sm:$0xff] %v412
    %445 = vst [vmem:[#allocation2 + $0xe0] sm:$0xff] %v413
    %446 = vst [vmem:[#allocation2 + $0xe8] sm:$0xff] %v414
    %447 = vst [vmem:[#allocation2 + $0xf0] sm:$0xff] %v415
    %448 = vst [vmem:[#allocation2 + $0xf8] sm:$0xff] %v416
    // Predicated region
    $region26: #{tpu_custom_call.1} parent=1 // pred_check
      %p449 = pneg %p44
    $region27: #{tpu_custom_call.1} parent=1 // pred_check_branch
      %451 = sbr.rel (%p449) target = $region29
    $region28: #{tpu_custom_call.1} parent=1 // pred_region
      %v452 = vld [vmem:[#allocation2] sm:$0xff]
      %v453 = vld [vmem:[#allocation2 + $0x8] sm:$0xff]
      %v454 = vld [vmem:[#allocation2 + $0x10] sm:$0xff]
      %v455 = vld [vmem:[#allocation2 + $0x18] sm:$0xff]
      %v456 = vld [vmem:[#allocation2 + $0x20] sm:$0xff]
      %v457 = vld [vmem:[#allocation2 + $0x28] sm:$0xff]
      %v458 = vld [vmem:[#allocation2 + $0x30] sm:$0xff]
      %v459 = vld [vmem:[#allocation2 + $0x38] sm:$0xff]
      %v460 = vld [vmem:[#allocation2 + $0x40] sm:$0xff]
      %v461 = vld [vmem:[#allocation2 + $0x48] sm:$0xff]
      %v462 = vld [vmem:[#allocation2 + $0x50] sm:$0xff]
      %v463 = vld [vmem:[#allocation2 + $0x58] sm:$0xff]
      %v464 = vld [vmem:[#allocation2 + $0x60] sm:$0xff]
      %v465 = vld [vmem:[#allocation2 + $0x68] sm:$0xff]
      %v466 = vld [vmem:[#allocation2 + $0x70] sm:$0xff]
      %v467 = vld [vmem:[#allocation2 + $0x78] sm:$0xff]
      %v468 = vld [vmem:[#allocation2 + $0x80] sm:$0xff]
      %v469 = vld [vmem:[#allocation2 + $0x88] sm:$0xff]
      %v470 = vld [vmem:[#allocation2 + $0x90] sm:$0xff]
      %v471 = vld [vmem:[#allocation2 + $0x98] sm:$0xff]
      %v472 = vld [vmem:[#allocation2 + $0xa0] sm:$0xff]
      %v473 = vld [vmem:[#allocation2 + $0xa8] sm:$0xff]
      %v474 = vld [vmem:[#allocation2 + $0xb0] sm:$0xff]
      %v475 = vld [vmem:[#allocation2 + $0xb8] sm:$0xff]
      %v476 = vld [vmem:[#allocation2 + $0xc0] sm:$0xff]
      %v477 = vld [vmem:[#allocation2 + $0xc8] sm:$0xff]
      %v478 = vld [vmem:[#allocation2 + $0xd0] sm:$0xff]
      %v479 = vld [vmem:[#allocation2 + $0xd8] sm:$0xff]
      %v480 = vld [vmem:[#allocation2 + $0xe0] sm:$0xff]
      %v481 = vld [vmem:[#allocation2 + $0xe8] sm:$0xff]
      %v482 = vld [vmem:[#allocation2 + $0xf0] sm:$0xff]
      %v483 = vld [vmem:[#allocation2 + $0xf8] sm:$0xff]
      %v484 = vld [vmem:[%s2] sm:$0x3]
      %v486 = vlaneseq
      %v487 = vshrl.u32 %v486, 7
      %v488 = vsub.s32 0, %v487
      %v489 = vrot.slane %v484, %v488
      %v490 = vlaneseq
      %v491 = vshrl.u32 %v490, 7
      %v492 = vsub.s32 1, %v491
      %v493 = vrot.slane %v484, %v492
      %v496 = vadd.f32 %v452, %v489
      %v497 = vadd.f32 %v453, %v493
      %v498 = vadd.f32 %v454, %v489
      %v499 = vadd.f32 %v455, %v493
      %v500 = vadd.f32 %v456, %v489
      %v501 = vadd.f32 %v457, %v493
      %v502 = vadd.f32 %v458, %v489
      %v503 = vadd.f32 %v459, %v493
      %v504 = vadd.f32 %v460, %v489
      %v505 = vadd.f32 %v461, %v493
      %v506 = vadd.f32 %v462, %v489
      %v507 = vadd.f32 %v463, %v493
      %v508 = vadd.f32 %v464, %v489
      %v509 = vadd.f32 %v465, %v493
      %v510 = vadd.f32 %v466, %v489
      %v511 = vadd.f32 %v467, %v493
      %v512 = vadd.f32 %v468, %v489
      %v513 = vadd.f32 %v469, %v493
      %v514 = vadd.f32 %v470, %v489
      %v515 = vadd.f32 %v471, %v493
      %v516 = vadd.f32 %v472, %v489
      %v517 = vadd.f32 %v473, %v493
      %v518 = vadd.f32 %v474, %v489
      %v519 = vadd.f32 %v475, %v493
      %v520 = vadd.f32 %v476, %v489
      %v521 = vadd.f32 %v477, %v493
      %v522 = vadd.f32 %v478, %v489
      %v523 = vadd.f32 %v479, %v493
      %v524 = vadd.f32 %v480, %v489
      %v525 = vadd.f32 %v481, %v493
      %v526 = vadd.f32 %v482, %v489
      %v527 = vadd.f32 %v483, %v493
      %528 = vst [vmem:[#allocation8] sm:$0xff] %v496
      %529 = vst [vmem:[#allocation8 + $0x8] sm:$0xff] %v497
      %530 = vst [vmem:[#allocation8 + $0x10] sm:$0xff] %v498
      %531 = vst [vmem:[#allocation8 + $0x18] sm:$0xff] %v499
      %532 = vst [vmem:[#allocation8 + $0x20] sm:$0xff] %v500
      %533 = vst [vmem:[#allocation8 + $0x28] sm:$0xff] %v501
      %534 = vst [vmem:[#allocation8 + $0x30] sm:$0xff] %v502
      %535 = vst [vmem:[#allocation8 + $0x38] sm:$0xff] %v503
      %536 = vst [vmem:[#allocation8 + $0x40] sm:$0xff] %v504
      %537 = vst [vmem:[#allocation8 + $0x48] sm:$0xff] %v505
      %538 = vst [vmem:[#allocation8 + $0x50] sm:$0xff] %v506
      %539 = vst [vmem:[#allocation8 + $0x58] sm:$0xff] %v507
      %540 = vst [vmem:[#allocation8 + $0x60] sm:$0xff] %v508
      %541 = vst [vmem:[#allocation8 + $0x68] sm:$0xff] %v509
      %542 = vst [vmem:[#allocation8 + $0x70] sm:$0xff] %v510
      %543 = vst [vmem:[#allocation8 + $0x78] sm:$0xff] %v511
      %544 = vst [vmem:[#allocation8 + $0x80] sm:$0xff] %v512
      %545 = vst [vmem:[#allocation8 + $0x88] sm:$0xff] %v513
      %546 = vst [vmem:[#allocation8 + $0x90] sm:$0xff] %v514
      %547 = vst [vmem:[#allocation8 + $0x98] sm:$0xff] %v515
      %548 = vst [vmem:[#allocation8 + $0xa0] sm:$0xff] %v516
      %549 = vst [vmem:[#allocation8 + $0xa8] sm:$0xff] %v517
      %550 = vst [vmem:[#allocation8 + $0xb0] sm:$0xff] %v518
      %551 = vst [vmem:[#allocation8 + $0xb8] sm:$0xff] %v519
      %552 = vst [vmem:[#allocation8 + $0xc0] sm:$0xff] %v520
      %553 = vst [vmem:[#allocation8 + $0xc8] sm:$0xff] %v521
      %554 = vst [vmem:[#allocation8 + $0xd0] sm:$0xff] %v522
      %555 = vst [vmem:[#allocation8 + $0xd8] sm:$0xff] %v523
      %556 = vst [vmem:[#allocation8 + $0xe0] sm:$0xff] %v524
      %557 = vst [vmem:[#allocation8 + $0xe8] sm:$0xff] %v525
      %558 = vst [vmem:[#allocation8 + $0xf0] sm:$0xff] %v526
      %559 = vst [vmem:[#allocation8 + $0xf8] sm:$0xff] %v527
    $region29: #{tpu_custom_call.1} parent=1 // pred_fallthru
      _
    // Predicated region
    $region30: #{tpu_custom_call.1} parent=1 // pred_check
      _
    $region31: #{tpu_custom_call.1} parent=1 // pred_check_branch
      %561 = sbr.rel (0) target = $region33
    $region32: #{tpu_custom_call.1} parent=1 // pred_region
      %s563 = ssub.s32 4096, 4096
      %564 = vsyncadd [#allocation5], %s563
      %s565 = sshll.u32 [#allocation8], 4
      %s566 = int_to_ptr.vmem [resolvable:$true] %s565
      %571 = dma.vmem_to_hbm [thread:$0]  %s566, 4096, %s3, [#allocation5], 256, 256, 16
    $region33: #{tpu_custom_call.1} parent=1 // pred_fallthru
      _
    // Predicated region
    $region34: #{tpu_custom_call.1} parent=1 // pred_check
      _
    $region35: #{tpu_custom_call.1} parent=1 // pred_check_branch
      %573 = sbr.rel (0) target = $region37
    $region36: #{tpu_custom_call.1} parent=1 // pred_region
      %574 = dma.done [#allocation5], 4096
    $region37: #{tpu_custom_call.1} parent=1 // pred_fallthru
      _
    %575 = vsyncpa [#allocation4], 1
    %576 = vsyncpa [#allocation7], 1
    %577 = vsyncpa [#allocation5], 1

</llo_original>
